<compile_context>
chip_gen: v7x
topology: tpu7x:2x2x1
jax: 0.10.0
libtpu: 0.0.40
codegen_flags: <defaults>
</compile_context>

<pallas_src>
import functools

import jax
import jax.numpy as jnp
from jax.experimental import pallas as pl
from jax.experimental.pallas import tpu as pltpu

LANE = 128             # TPU lane width (minor dim)
SUB = 8                # f32 sublanes per vreg
MAX_TILE_ROWS = 2048   # rows per grid step (1 MiB f32 per input per buffer)
CHUNK_ROWS = 512       # in-kernel accumulation chunk (256 KiB f32 temporaries)
VMEM_LIMIT = 32 * 1024 * 1024   # explicit scoped-VMEM budget, safe on v5e/v6e/v7x


def _round_up(x, m):
    return ((x + m - 1) // m) * m


def _focal_kernel(pred_ref, gt_ref, tot_ref, npos_ref, *,
                  tile_rows, chunk_rows, steps, valid_rows, may_be_ragged):
    """Single-log focal-loss terms folded into resident (8,128) accumulators."""
    c = pl.program_id(0)
    i = pl.program_id(1)

    @pl.when(i == 0)
    def _init():
        tot_ref[...] = jnp.zeros_like(tot_ref)
        npos_ref[...] = jnp.zeros_like(npos_ref)

    # Unclamped row base: >= valid_rows for the phantom block on core 1.
    row_base = (c * steps + i) * tile_rows
    n_chunks = tile_rows // chunk_rows
    r = chunk_rows // SUB

    def accumulate(sanitize):
        tot = jnp.zeros((SUB, LANE), jnp.float32)
        npos = jnp.zeros((SUB, LANE), jnp.float32)
        # Unrolled chunk loop with static, (8,128)-aligned slices: live VMEM
        # temporaries stay at a few hundred KiB instead of a full tile.
        for k in range(n_chunks):
            lo = k * chunk_rows
            pred = pred_ref[lo:lo + chunk_rows, :].astype(jnp.float32)
            gt = gt_ref[lo:lo + chunk_rows, :].astype(jnp.float32)
            if sanitize:
                # Rows at/after valid_rows hold unspecified data (ragged last
                # tile or phantom block). gt=2.0 zeroes both the weight and the
                # positive count; pred=0.5 keeps the log argument finite.
                row = (jax.lax.broadcasted_iota(jnp.int32, (chunk_rows, LANE), 0)
                       + (row_base + lo))
                valid = row < valid_rows
                pred = jnp.where(valid, pred, 0.5)
                gt = jnp.where(valid, gt, 2.0)

            is_pos = gt == 1.0
            one_m_pred = 1.0 - pred
            one_m_gt = 1.0 - gt
            sq = one_m_gt * one_m_gt
            w_neg = (pred * pred) * (sq * sq)          # pred^2 * (1-gt)^4
            w_pos = one_m_pred * one_m_pred            # (1-pred)^2
            # pos/neg branches are mutually exclusive -> one log per element.
            weight = jnp.where(is_pos, w_pos, jnp.where(gt < 1.0, w_neg, 0.0))
            arg = jnp.where(is_pos, pred, one_m_pred)
            term = jnp.log(arg) * weight

            # fold (chunk_rows,128) -> (8,128): cross-vreg VALU adds only.
            tot = tot + term.reshape(r, SUB, LANE).sum(axis=0)
            npos = npos + is_pos.astype(jnp.float32).reshape(r, SUB, LANE).sum(axis=0)

        tot_ref[...] += tot
        npos_ref[...] += npos

    if may_be_ragged:
        block_end = row_base + tile_rows

        @pl.when(block_end <= valid_rows)
        def _interior():
            accumulate(sanitize=False)

        @pl.when(block_end > valid_rows)
        def _ragged():
            accumulate(sanitize=True)
    else:
        accumulate(sanitize=False)


def focal_loss_pallas(pred, gt):
    """FocalLoss.forward(out, target) -> scalar loss (forward pass only)."""
    assert pred.shape == gt.shape
    total = int(pred.size)

    pred_flat = pred.reshape(-1)
    gt_flat = gt.reshape(-1)

    tail = total % LANE
    n_main = total - tail
    rows = n_main // LANE

    tot_sum = jnp.float32(0.0)
    npos_sum = jnp.float32(0.0)

    if rows > 0:
        if tail:
            # TODO(synk): this prefix slice may materialize a copy when the
            # element count is not lane-aligned; real CenterNet heatmaps
            # (c*h*w multiple of 128) never hit this path. allow_input_fusion
            # could fuse it away if it ever matters.
            pred2 = pred_flat[:n_main].reshape(rows, LANE)
            gt2 = gt_flat[:n_main].reshape(rows, LANE)
        else:
            pred2 = pred_flat.reshape(rows, LANE)
            gt2 = gt_flat.reshape(rows, LANE)

        rows_up = _round_up(rows, SUB)
        if rows_up <= CHUNK_ROWS:
            tile_rows = rows_up
            chunk_rows = rows_up
        else:
            tile_rows = min(MAX_TILE_ROWS, _round_up(rows, CHUNK_ROWS))
            chunk_rows = CHUNK_ROWS

        n_blocks = pl.cdiv(rows, tile_rows)
        # Always use both TensorCores when there is more than one block; an odd
        # block count gives core 1 a phantom trailing block that is clamped in
        # the index_map and fully masked inside the kernel.
        num_cores = 2 if n_blocks >= 2 else 1
        steps = pl.cdiv(n_blocks, num_cores)
        has_phantom = (num_cores * steps) != n_blocks
        may_be_ragged = (rows % tile_rows != 0) or has_phantom
        last_block = n_blocks - 1

        def in_index(c, i):
            blk = c * steps + i
            if has_phantom:
                blk = jnp.minimum(blk, last_block)   # phantom -> re-read last block (masked)
            return (blk, 0)

        kernel = functools.partial(
            _focal_kernel, tile_rows=tile_rows, chunk_rows=chunk_rows,
            steps=steps, valid_rows=rows, may_be_ragged=may_be_ragged)

        tile_spec = pl.BlockSpec((tile_rows, LANE), in_index)
        acc_spec = pl.BlockSpec((SUB, LANE), lambda c, i: (c, 0))
        acc_shape = jax.ShapeDtypeStruct((num_cores * SUB, LANE), jnp.float32)

        n_elems = rows * LANE
        in_bytes = pred2.dtype.itemsize + gt2.dtype.itemsize
        cost = pl.CostEstimate(flops=15 * n_elems,
                               transcendentals=n_elems,
                               bytes_accessed=in_bytes * n_elems)

        # TODO(synk): on v7x, gate the core axis to pltpu.CORE_PARALLEL
        # (generation-specific); "parallel" is the portable megacore spelling.
        tot_s, npos_s = pl.pallas_call(
            kernel,
            out_shape=(acc_shape, acc_shape),
            grid_spec=pltpu.PrefetchScalarGridSpec(
                num_scalar_prefetch=0,
                grid=(num_cores, steps),
                in_specs=[tile_spec, tile_spec],
                out_specs=(acc_spec, acc_spec),
            ),
            compiler_params=pltpu.CompilerParams(
                dimension_semantics=("parallel", "arbitrary"),
                vmem_limit_bytes=VMEM_LIMIT),
            cost_estimate=cost,
        )(pred2, gt2)

        # TODO(synk): these two tiny cross-lane sums could move into a
        # pl.when(i == steps - 1) kernel epilogue writing per-core SMEM scalars.
        tot_sum = tot_sum + jnp.sum(tot_s)
        npos_sum = npos_sum + jnp.sum(npos_s)

    if tail:
        # Sub-lane remainder (< 128 elements): plain JAX, negligible cost.
        p_t = pred_flat[n_main:].astype(jnp.float32)
        g_t = gt_flat[n_main:].astype(jnp.float32)
        is_pos = (g_t == 1.0).astype(jnp.float32)
        is_neg = (g_t < 1.0).astype(jnp.float32)
        pos_l = jnp.log(p_t) * (1.0 - p_t) ** 2 * is_pos
        neg_l = jnp.log(1.0 - p_t) * p_t ** 2 * (1.0 - g_t) ** 4 * is_neg
        tot_sum = tot_sum + jnp.sum(pos_l) + jnp.sum(neg_l)
        npos_sum = npos_sum + jnp.sum(is_pos)

    # pos_loss is identically 0 whenever num_pos == 0, so -(total)/1 == -neg_loss,
    # matching the PyTorch `if num_pos == 0` branch exactly.
    safe_den = jnp.where(npos_sum == 0.0, 1.0, npos_sum)
    return -tot_sum / safe_den


def focal_loss_ref(pred, gt):
    """Pure-JAX reference matching the PyTorch _neg_loss exactly."""
    pred = pred.astype(jnp.float32)
    gt = gt.astype(jnp.float32)
    pos_inds = (gt == 1.0).astype(jnp.float32)
    neg_inds = (gt < 1.0).astype(jnp.float32)
    neg_weights = (1.0 - gt) ** 4
    pos_loss = jnp.sum(jnp.log(pred) * (1.0 - pred) ** 2 * pos_inds)
    neg_loss = jnp.sum(jnp.log(1.0 - pred) * pred ** 2 * neg_weights * neg_inds)
    num_pos = jnp.sum(pos_inds)
    safe_den = jnp.where(num_pos == 0.0, 1.0, num_pos)
    return jnp.where(num_pos == 0.0,
                     -neg_loss,
                     -(pos_loss + neg_loss) / safe_den)


if __name__ == "__main__":
    B, C, H, W = 2, 4, 16, 16
    key = jax.random.PRNGKey(0)
    k_pred, k_sel, k_gt = jax.random.split(key, 3)

    # pred: sigmoid-style heatmap in (0, 1)
    pred = jax.random.uniform(k_pred, (B, C, H, W), jnp.float32,
                              minval=1e-3, maxval=1.0 - 1e-3)
    # gt: Gaussian-style heatmap in [0, 1) with a sprinkling of exact 1.0 peaks
    soft = jax.random.uniform(k_gt, (B, C, H, W), jnp.float32) * 0.95
    peaks = jax.random.uniform(k_sel, (B, C, H, W), jnp.float32) < 0.05
    gt = jnp.where(peaks, 1.0, soft)

    loss = jax.block_until_ready(focal_loss_pallas(pred, gt))
    ref = jax.block_until_ready(focal_loss_ref(pred, gt))

    assert jnp.isfinite(loss), f"non-finite loss: {loss}"
    assert jnp.allclose(loss, ref, rtol=1e-5, atol=1e-5), (loss, ref)
    print("KERNEL_OK")
</pallas_src>

<mosaic_0001>
module attributes {stable_mosaic.version = 11 : i64} {
  func.func @_focal_kernel(%arg0: i32, %arg1: i32, %arg2: memref<16x128xf32, #tpu.memory_space<vmem>>, %arg3: memref<16x128xf32, #tpu.memory_space<vmem>>, %arg4: memref<8x128xf32, #tpu.memory_space<vmem>>, %arg5: memref<8x128xf32, #tpu.memory_space<vmem>>) attributes {dimension_semantics = [#tpu.dimension_semantics<parallel>, #tpu.dimension_semantics<arbitrary>], iteration_bounds = array<i64: 1, 1>, scalar_prefetch = 0 : i64, scratch_operands = 0 : i64, tpu.core_type = #tpu.core_type<tc>, window_params = [{transform_indices = @transform_0, window_bounds = array<i64: 16, 128>}, {transform_indices = @transform_1, window_bounds = array<i64: 16, 128>}, {transform_indices = @transform_2, window_bounds = array<i64: 8, 128>}, {transform_indices = @transform_3, window_bounds = array<i64: 8, 128>}]} {
    %c0_i32 = arith.constant 0 : i32
    %0 = arith.cmpi eq, %arg1, %c0_i32 : i32
    %1 = arith.extui %0 : i1 to i32
    %c0_i32_0 = arith.constant 0 : i32
    %2 = arith.cmpi ne, %1, %c0_i32_0 : i32
    scf.if %2 {
      %cst_20 = arith.constant 0.000000e+00 : f32
      %40 = vector.broadcast %cst_20 : f32 to vector<8x128xf32>
      %c0_21 = arith.constant 0 : index
      %c0_22 = arith.constant 0 : index
      %41 = vector.load %arg4[%c0_21, %c0_22] : memref<8x128xf32, #tpu.memory_space<vmem>>, vector<8x128xf32>
      tpu.vector_store %arg4[%c0_21, %c0_22], %40 {strides = array<i32>} : memref<8x128xf32, #tpu.memory_space<vmem>>, vector<8x128xf32>,
      %cst_23 = arith.constant 0.000000e+00 : f32
      %42 = vector.broadcast %cst_23 : f32 to vector<8x128xf32>
      %c0_24 = arith.constant 0 : index
      %c0_25 = arith.constant 0 : index
      %43 = vector.load %arg5[%c0_24, %c0_25] : memref<8x128xf32, #tpu.memory_space<vmem>>, vector<8x128xf32>
      tpu.vector_store %arg5[%c0_24, %c0_25], %42 {strides = array<i32>} : memref<8x128xf32, #tpu.memory_space<vmem>>, vector<8x128xf32>,
    } else {
    }
    %cst = arith.constant 0.000000e+00 : f32
    %3 = vector.broadcast %cst : f32 to vector<8x128xf32>
    %cst_1 = arith.constant 0.000000e+00 : f32
    %4 = vector.broadcast %cst_1 : f32 to vector<8x128xf32>
    %c0 = arith.constant 0 : index
    %c0_2 = arith.constant 0 : index
    %5 = vector.load %arg2[%c0, %c0_2] : memref<16x128xf32, #tpu.memory_space<vmem>>, vector<16x128xf32>
    %c0_3 = arith.constant 0 : index
    %c0_4 = arith.constant 0 : index
    %6 = vector.load %arg3[%c0_3, %c0_4] : memref<16x128xf32, #tpu.memory_space<vmem>>, vector<16x128xf32>
    %cst_5 = arith.constant 1.000000e+00 : f32
    %7 = vector.broadcast %cst_5 : f32 to vector<16x128xf32>
    %8 = arith.cmpf oeq, %6, %7 : vector<16x128xf32>
    %cst_6 = arith.constant 1.000000e+00 : f32
    %9 = vector.broadcast %cst_6 : f32 to vector<16x128xf32>
    %10 = arith.subf %9, %5 : vector<16x128xf32>
    %cst_7 = arith.constant 1.000000e+00 : f32
    %11 = vector.broadcast %cst_7 : f32 to vector<16x128xf32>
    %12 = arith.subf %11, %6 : vector<16x128xf32>
    %13 = arith.mulf %12, %12 : vector<16x128xf32>
    %14 = arith.mulf %5, %5 : vector<16x128xf32>
    %15 = arith.mulf %13, %13 : vector<16x128xf32>
    %16 = arith.mulf %14, %15 : vector<16x128xf32>
    %17 = arith.mulf %10, %10 : vector<16x128xf32>
    %cst_8 = arith.constant 1.000000e+00 : f32
    %18 = vector.broadcast %cst_8 : f32 to vector<16x128xf32>
    %19 = arith.cmpf olt, %6, %18 : vector<16x128xf32>
    %cst_9 = arith.constant 0.000000e+00 : f32
    %20 = vector.broadcast %cst_9 : f32 to vector<16x128xf32>
    %21 = arith.select %19, %16, %20 : vector<16x128xi1>, vector<16x128xf32>
    %22 = arith.select %8, %17, %21 : vector<16x128xi1>, vector<16x128xf32>
    %23 = arith.select %8, %5, %10 : vector<16x128xi1>, vector<16x128xf32>
    %24 = math.log %23 : vector<16x128xf32>
    %25 = arith.mulf %24, %22 : vector<16x128xf32>
    %26 = vector.shape_cast %25 : vector<16x128xf32> to vector<2x8x128xf32>
    %cst_10 = arith.constant dense<0.000000e+00> : vector<8x128xf32>
    %27 = vector.multi_reduction <add>, %26, %cst_10 [0] : vector<2x8x128xf32> to vector<8x128xf32>
    %28 = arith.addf %3, %27 : vector<8x128xf32>
    %29 = arith.extui %8 : vector<16x128xi1> to vector<16x128xi32>
    %30 = arith.sitofp %29 : vector<16x128xi32> to vector<16x128xf32>
    %31 = vector.shape_cast %30 : vector<16x128xf32> to vector<2x8x128xf32>
    %cst_11 = arith.constant dense<0.000000e+00> : vector<8x128xf32>
    %32 = vector.multi_reduction <add>, %31, %cst_11 [0] : vector<2x8x128xf32> to vector<8x128xf32>
    %33 = arith.addf %4, %32 : vector<8x128xf32>
    %c0_12 = arith.constant 0 : index
    %c0_13 = arith.constant 0 : index
    %34 = vector.load %arg4[%c0_12, %c0_13] : memref<8x128xf32, #tpu.memory_space<vmem>>, vector<8x128xf32>
    %35 = arith.addf %34, %28 : vector<8x128xf32>
    %c0_14 = arith.constant 0 : index
    %c0_15 = arith.constant 0 : index
    %36 = vector.load %arg4[%c0_14, %c0_15] : memref<8x128xf32, #tpu.memory_space<vmem>>, vector<8x128xf32>
    tpu.vector_store %arg4[%c0_14, %c0_15], %35 {strides = array<i32>} : memref<8x128xf32, #tpu.memory_space<vmem>>, vector<8x128xf32>,
    %c0_16 = arith.constant 0 : index
    %c0_17 = arith.constant 0 : index
    %37 = vector.load %arg5[%c0_16, %c0_17] : memref<8x128xf32, #tpu.memory_space<vmem>>, vector<8x128xf32>
    %38 = arith.addf %37, %33 : vector<8x128xf32>
    %c0_18 = arith.constant 0 : index
    %c0_19 = arith.constant 0 : index
    %39 = vector.load %arg5[%c0_18, %c0_19] : memref<8x128xf32, #tpu.memory_space<vmem>>, vector<8x128xf32>
    tpu.vector_store %arg5[%c0_18, %c0_19], %38 {strides = array<i32>} : memref<8x128xf32, #tpu.memory_space<vmem>>, vector<8x128xf32>,
    return
  }
  func.func @transform_0(%arg0: i32, %arg1: i32) -> (i32, i32) {
    %c1_i32 = arith.constant 1 : i32
    %0 = arith.muli %arg0, %c1_i32 : i32
    %1 = arith.addi %0, %arg1 : i32
    %c0_i32 = arith.constant 0 : i32
    %c0_i32_0 = arith.constant 0 : i32
    return %1, %c0_i32 : i32, i32
  }
  func.func @transform_1(%arg0: i32, %arg1: i32) -> (i32, i32) {
    %c1_i32 = arith.constant 1 : i32
    %0 = arith.muli %arg0, %c1_i32 : i32
    %1 = arith.addi %0, %arg1 : i32
    %c0_i32 = arith.constant 0 : i32
    %c0_i32_0 = arith.constant 0 : i32
    return %1, %c0_i32 : i32, i32
  }
  func.func @transform_2(%arg0: i32, %arg1: i32) -> (i32, i32) {
    %c0_i32 = arith.constant 0 : i32
    %c0_i32_0 = arith.constant 0 : i32
    return %arg0, %c0_i32 : i32, i32
  }
  func.func @transform_3(%arg0: i32, %arg1: i32) -> (i32, i32) {
    %c0_i32 = arith.constant 0 : i32
    %c0_i32_0 = arith.constant 0 : i32
    return %arg0, %c0_i32 : i32, i32
  }
}

</mosaic_0001>

<llo_original>
// kernel: tpu_custom_call.1
$region0: #{tpu_custom_call.1}
  #allocation0 [shape = 'u32[]', space=smem, size = 0x4, offset = 0x4, fixed_abs, tag = 'smem constant byte address 0x4 - core index']
  #allocation1 [shape = 'u32[144,128]{1,0:T(1,128)}', space=vmem, size = 0x12000, scoped, tag = 'internal scratch']
  %s0 = inlined_call_operand.hbm [shape: f32[16,128], index: 0, kind: input, shape index: {}]
  %s1 = inlined_call_operand.hbm [shape: f32[16,128], index: 1, kind: input, shape index: {}]
  %s2 = inlined_call_operand.hbm [shape: f32[8,128], index: 2, kind: output, shape index: {0}]
  %s3 = inlined_call_operand.hbm [shape: f32[8,128], index: 3, kind: output, shape index: {1}]
  %4 = xla_tuple %s2, %s3
  %s5 = sld [smem:[#allocation0]]
  $region38: #{tpu_custom_call.1} parent=0
    _
  %s7 = ssub.s32 1, %s5
  %s8 = scalar_select 0, %s7, %s5
  $region1: #{tpu_custom_call.1} parent=0
    #allocation2 [shape = 'u8[8192]{0}', space=vmem, size = 0x2000, scoped, tag = 'input window, operand 0, single buffered']
    #allocation3 [shape = 's32[1]{0}', space=sflag, size = 0x4, scoped, tag = 'scoped memory for tpu_custom_call.1']
    #allocation4 [shape = 's32[1]{0}', space=sflag, size = 0x4, scoped, tag = 'scoped memory for tpu_custom_call.1']
    #allocation5 [shape = 'u8[8192]{0}', space=vmem, size = 0x2000, scoped, tag = 'input window, operand 1, single buffered']
    #allocation6 [shape = 's32[1]{0}', space=sflag, size = 0x4, scoped, tag = 'scoped memory for tpu_custom_call.1']
    #allocation7 [shape = 'u8[4096]{0}', space=vmem, size = 0x1000, scoped, tag = 'output window, operand 0, single buffered']
    #allocation8 [shape = 'u8[4096]{0}', space=vmem, size = 0x1000, scoped, tag = 'output window, operand 1, single buffered']
    #allocation9 [shape = 's32[1]{0}', space=sflag, size = 0x4, scoped, tag = 'scoped memory for tpu_custom_call.1']
    %9 = vsyncpa [#allocation3], 0
    %10 = vsyncpa [#allocation6], 0
    %11 = vsyncpa [#allocation4], 0
    %12 = vsyncpa [#allocation9], 0
    // Predicated region
    $region2: #{tpu_custom_call.1} parent=1 // pred_check
      _
    $region3: #{tpu_custom_call.1} parent=1 // pred_check_branch
      %14 = sbr.rel (0) target = $region5
    $region4: #{tpu_custom_call.1} parent=1 // pred_region
      %s15 = sadd.s32 0, 0
      %s16 = smul.u32 2, %s15
      %s18 = ssub.s32 256, 256
      %19 = vsyncadd [#allocation3], %s18
      %s20 = smul.addr %s16, 128
      %s21 = scalar_lea.hbm %s0, %s20
      %s22 = sshll.u32 [#allocation2], 4
      %s23 = int_to_ptr.vmem [resolvable:$true] %s22
      %28 = dma.hbm_to_vmem [thread:$0]  %s21, 256, %s23, [#allocation3], 128, 128, 8
    $region5: #{tpu_custom_call.1} parent=1 // pred_fallthru
      _
    // Predicated region
    $region6: #{tpu_custom_call.1} parent=1 // pred_check
      _
    $region7: #{tpu_custom_call.1} parent=1 // pred_check_branch
      %30 = sbr.rel (0) target = $region9
    $region8: #{tpu_custom_call.1} parent=1 // pred_region
      %s31 = sadd.s32 0, 0
      %s32 = smul.u32 2, %s31
      %s34 = ssub.s32 256, 256
      %35 = vsyncadd [#allocation6], %s34
      %s36 = smul.addr %s32, 128
      %s37 = scalar_lea.hbm %s1, %s36
      %s38 = sshll.u32 [#allocation5], 4
      %s39 = int_to_ptr.vmem [resolvable:$true] %s38
      %44 = dma.hbm_to_vmem [thread:$0]  %s37, 256, %s39, [#allocation6], 128, 128, 8
    $region9: #{tpu_custom_call.1} parent=1 // pred_fallthru
      _
    // Predicated region
    $region10: #{tpu_custom_call.1} parent=1 // pred_check
      _
    $region11: #{tpu_custom_call.1} parent=1 // pred_check_branch
      %46 = sbr.rel (0) target = $region13
    $region12: #{tpu_custom_call.1} parent=1 // pred_region
      %47 = dma.done [#allocation3], 256
    $region13: #{tpu_custom_call.1} parent=1 // pred_fallthru
      _
    // Predicated region
    $region14: #{tpu_custom_call.1} parent=1 // pred_check
      _
    $region15: #{tpu_custom_call.1} parent=1 // pred_check_branch
      %49 = sbr.rel (0) target = $region17
    $region16: #{tpu_custom_call.1} parent=1 // pred_region
      %50 = dma.done [#allocation6], 256
    $region17: #{tpu_custom_call.1} parent=1 // pred_fallthru
      _
    %s51 = sadd.s32 0, 0
    %s52 = smul.u32 2, %s51
    %s53 = sadd.s32 0, 0
    %s54 = smul.u32 2, %s53
    %p55 = scmp.eq.s32.totalorder 0, 0
    // Predicated region
    $region18: #{tpu_custom_call.1} parent=1 // pred_check
      %p56 = pneg %p55
    $region19: #{tpu_custom_call.1} parent=1 // pred_check_branch
      %58 = sbr.rel (%p56) target = $region21
    $region20: #{tpu_custom_call.1} parent=1 // pred_region
      %59 = vst [vmem:[#allocation7] sm:$0xff] 0.0
      %60 = vst [vmem:[#allocation8] sm:$0xff] 0.0
    $region21: #{tpu_custom_call.1} parent=1 // pred_fallthru
      _
    %v61 = vld [vmem:[#allocation2] sm:$0xff]
    %v62 = vld [vmem:[#allocation2 + $0x8] sm:$0xff]
    %v63 = vld [vmem:[#allocation5] sm:$0xff]
    %v64 = vld [vmem:[#allocation5 + $0x8] sm:$0xff]
    %vm65 = vcmp.eq.f32.partialorder %v63, 1.0
    %vm66 = vcmp.eq.f32.partialorder %v64, 1.0
    %v67 = vsub.f32 1.0, %v61
    %v68 = vsub.f32 1.0, %v62
    %v69 = vsub.f32 1.0, %v63
    %v70 = vsub.f32 1.0, %v64
    %v71 = vmul.f32 %v69, %v69
    %v72 = vmul.f32 %v70, %v70
    %v73 = vmul.f32 %v61, %v61
    %v74 = vmul.f32 %v62, %v62
    %v75 = vmul.f32 %v71, %v71
    %v76 = vmul.f32 %v72, %v72
    %v77 = vmul.f32 %v73, %v75
    %v78 = vmul.f32 %v74, %v76
    %v79 = vmul.f32 %v67, %v67
    %v80 = vmul.f32 %v68, %v68
    %vm81 = vcmp.lt.f32.partialorder %v63, 1.0
    %vm82 = vcmp.lt.f32.partialorder %v64, 1.0
    %v83 = vsel %vm81, %v77, 0.0
    %v84 = vsel %vm82, %v78, 0.0
    %v85 = vsel %vm65, %v79, %v83
    %v86 = vsel %vm66, %v80, %v84
    %v87 = vsel %vm65, %v61, %v67
    %v88 = vsel %vm66, %v62, %v68
    %v89 = vlog2.pop %v87
    %v90 = vmul.f32 %v89, 0.6931472
    %v91 = vlog2.pop %v88
    %v92 = vmul.f32 %v91, 0.6931472
    %v93 = vmul.f32 %v90, %v85
    %v94 = vmul.f32 %v92, %v86
    %v95 = vadd.f32 %v93, %v94
    %v96 = vadd.f32 %v95, 0.0
    %v97 = vsel %vm65, 1, 0
    %v98 = vsel %vm66, 1, 0
    %v99 = vcvt.s32.f32 %v97
    %v100 = vcvt.s32.f32 %v98
    %v101 = vadd.f32 %v99, %v100
    %v102 = vadd.f32 %v101, 0.0
    %v103 = vld [vmem:[#allocation7] sm:$0xff]
    %v104 = vadd.f32 %v103, %v96
    %105 = vst [vmem:[#allocation7] sm:$0xff] %v104
    %v106 = vld [vmem:[#allocation8] sm:$0xff]
    %v107 = vadd.f32 %v106, %v102
    %108 = vst [vmem:[#allocation8] sm:$0xff] %v107
    // Predicated region
    $region22: #{tpu_custom_call.1} parent=1 // pred_check
      _
    $region23: #{tpu_custom_call.1} parent=1 // pred_check_branch
      %110 = sbr.rel (0) target = $region25
    $region24: #{tpu_custom_call.1} parent=1 // pred_region
      %s112 = ssub.s32 128, 128
      %113 = vsyncadd [#allocation4], %s112
      %s115 = sshll.u32 [#allocation7], 4
      %s116 = int_to_ptr.vmem [resolvable:$true] %s115
      %118 = dma.vmem_to_hbm [thread:$0]  %s116, 128, %s2, [#allocation4]
    $region25: #{tpu_custom_call.1} parent=1 // pred_fallthru
      _
    // Predicated region
    $region26: #{tpu_custom_call.1} parent=1 // pred_check
      _
    $region27: #{tpu_custom_call.1} parent=1 // pred_check_branch
      %120 = sbr.rel (0) target = $region29
    $region28: #{tpu_custom_call.1} parent=1 // pred_region
      %s122 = ssub.s32 128, 128
      %123 = vsyncadd [#allocation9], %s122
      %s125 = sshll.u32 [#allocation8], 4
      %s126 = int_to_ptr.vmem [resolvable:$true] %s125
      %128 = dma.vmem_to_hbm [thread:$0]  %s126, 128, %s3, [#allocation9]
    $region29: #{tpu_custom_call.1} parent=1 // pred_fallthru
      _
    // Predicated region
    $region30: #{tpu_custom_call.1} parent=1 // pred_check
      _
    $region31: #{tpu_custom_call.1} parent=1 // pred_check_branch
      %130 = sbr.rel (0) target = $region33
    $region32: #{tpu_custom_call.1} parent=1 // pred_region
      %131 = dma.done [#allocation4], 128
    $region33: #{tpu_custom_call.1} parent=1 // pred_fallthru
      _
    // Predicated region
    $region34: #{tpu_custom_call.1} parent=1 // pred_check
      _
    $region35: #{tpu_custom_call.1} parent=1 // pred_check_branch
      %133 = sbr.rel (0) target = $region37
    $region36: #{tpu_custom_call.1} parent=1 // pred_region
      %134 = dma.done [#allocation9], 128
    $region37: #{tpu_custom_call.1} parent=1 // pred_fallthru
      _
    %135 = vsyncpa [#allocation3], 1
    %136 = vsyncpa [#allocation6], 1
    %137 = vsyncpa [#allocation4], 1
    %138 = vsyncpa [#allocation9], 1

</llo_original>
